<compile_context>
chip_gen: v6e
topology: v6e:2x2x1
jax: 0.10.0
libtpu: 0.0.40
codegen_flags: <defaults>
</compile_context>

<pallas_src>
from typing import NamedTuple

import jax
import jax.numpy as jnp
from jax.experimental import pallas as pl
from jax.experimental.pallas import tpu as pltpu


def _round_up(x, m):
    return ((x + m - 1) // m) * m


def _cdiv(a, b):
    return -(-a // b)


def _pick_tile(extent, target, granule):
    """Divisor-style tile: split `extent` (a multiple of `granule`) into
    ~extent/target chunks; padding is bounded to < granule per chunk instead of
    rounding the whole extent up to a full tile."""
    if extent <= target:
        return extent
    n = _cdiv(extent, target)
    return _round_up(_cdiv(extent, n), granule)


class _Plan(NamedTuple):
    tn: int   # N (hidden) tile
    tk: int   # K (input-feature) tile
    Kp: int   # padded K  (multiple of tk)
    Hp: int   # padded H  (multiple of tn)
    K: int    # true input dim
    H: int    # true hidden dim


def prepare_linear_params(w, b, *, tn_target=512, tk_target=None,
                          split_n_for_megacore=True):
    """One-time (init) preparation of nn.Linear params for the Pallas kernel.

    w: [K, H] (i.e. PyTorch weight [H, K] pre-transposed), b: [H].
    Returns (wp [Kp, Hp], bp [1, Hp], plan)."""
    K, H = w.shape
    if tk_target is None:
        # bf16 tiles are half the bytes -> allow a 2x larger K tile.
        tk_target = 1024 if w.dtype == jnp.bfloat16 else 512

    Kp0 = _round_up(K, 128)
    Hp0 = _round_up(H, 128)

    tk = _pick_tile(Kp0, tk_target, 128)
    tn = _pick_tile(Hp0, tn_target, 128)
    Kp = _round_up(Kp0, tk)
    Hp = _round_up(Hp0, tn)

    # Megacore (v7x has 2 TensorCores): if the whole H fits a single tile but
    # splits evenly into two lane-aligned halves, use 2 N-blocks so a
    # "parallel" grid axis has work for both cores regardless of batch size.
    if split_n_for_megacore and Hp // tn == 1 and Hp >= 256 and (Hp // 2) % 128 == 0:
        tn = Hp // 2

    wp = w
    if (Kp, Hp) != (K, H):
        wp = jnp.zeros((Kp, Hp), w.dtype).at[:K, :H].set(w)
    bp = jnp.zeros((1, Hp), b.dtype).at[0, :H].set(b)
    return wp, bp, _Plan(tn=tn, tk=tk, Kp=Kp, Hp=Hp, K=K, H=H)


def _linear_relu_kernel_single_k(x_ref, w_ref, b_ref, o_ref):
    """Fast path: whole K in one tile — no accumulator round-trips."""
    y = jnp.dot(x_ref[...], w_ref[...], preferred_element_type=jnp.float32)
    y = y + b_ref[...].astype(jnp.float32)
    o_ref[...] = jnp.maximum(y, 0.0).astype(o_ref.dtype)


def _linear_relu_kernel_acc(x_ref, w_ref, b_ref, o_ref, acc_ref):
    """General path: K split over grid axis 2; f32 VMEM accumulator.
    Bias is folded into the k==0 init, so the epilogue is just relu + cast."""
    k = pl.program_id(2)

    @pl.when(k == 0)
    def _():
        acc_ref[...] = pl.broadcast_to(
            b_ref[...].astype(jnp.float32), acc_ref.shape)

    acc_ref[...] += jnp.dot(x_ref[...], w_ref[...],
                            preferred_element_type=jnp.float32)

    @pl.when(k == pl.num_programs(2) - 1)
    def _():
        o_ref[...] = jnp.maximum(acc_ref[...], 0.0).astype(o_ref.dtype)


def target_input_layer(x, wp, bp, plan, *, tm_target=512):
    """relu(x @ W + b) with pre-prepared (padded) W [Kp, Hp], b [1, Hp]."""
    orig_shape = x.shape
    K = orig_shape[-1]
    assert K == plan.K, "input feature dim does not match prepared params"
    x2 = x.reshape(-1, K)
    B = x2.shape[0]
    dtype = x.dtype

    sub = 16 if dtype == jnp.bfloat16 else 8
    Bp0 = _round_up(B, sub)
    tm = _pick_tile(Bp0, tm_target, sub)
    Bp = _round_up(Bp0, tm)

    tn, tk, Kp, Hp = plan.tn, plan.tk, plan.Kp, plan.Hp
    nm, nn, nk = Bp // tm, Hp // tn, Kp // tk

    # Only the activation is padded per call (weight/bias were padded at init).
    xp = x2
    if (Bp, Kp) != (B, K):
        xp = jnp.zeros((Bp, Kp), dtype).at[:B, :K].set(x2)

    # Explicit scoped-VMEM budget: double-buffered x/w/out tiles + bias
    # (+ f32 accumulator only when K is split). Cap from hardware info.
    dx = jnp.dtype(dtype).itemsize
    dw = jnp.dtype(wp.dtype).itemsize
    db = jnp.dtype(bp.dtype).itemsize
    vmem_est = (2 * tm * tk * dx + 2 * tk * tn * dw + 2 * tm * tn * dx
                + 2 * tn * db + (0 if nk == 1 else tm * tn * 4))
    try:
        vmem_cap = int(pltpu.get_tpu_info().vmem_capacity_bytes)
    except Exception:  # pragma: no cover - conservative fallback
        vmem_cap = 64 * 1024 * 1024
    vmem_limit = min(max(2 * vmem_est, 32 * 1024 * 1024),
                     vmem_cap - 20 * 1024 * 1024)

    if nk == 1:
        kernel = _linear_relu_kernel_single_k
        grid = (nm, nn)
        in_specs = [
            pl.BlockSpec((tm, tk), lambda i, j: (i, 0)),   # x tile (full K)
            pl.BlockSpec((tk, tn), lambda i, j: (0, j)),   # W tile (full K)
            pl.BlockSpec((1, tn), lambda i, j: (0, j)),    # bias tile
        ]
        out_specs = pl.BlockSpec((tm, tn), lambda i, j: (i, j))
        scratch = []
        dims = ("parallel", "parallel")
    else:
        kernel = _linear_relu_kernel_acc
        grid = (nm, nn, nk)
        in_specs = [
            pl.BlockSpec((tm, tk), lambda i, j, k: (i, k)),  # x tile
            pl.BlockSpec((tk, tn), lambda i, j, k: (k, j)),  # W tile
            pl.BlockSpec((1, tn), lambda i, j, k: (0, j)),   # bias tile
        ]
        out_specs = pl.BlockSpec((tm, tn), lambda i, j, k: (i, j))
        scratch = [pltpu.VMEM((tm, tn), jnp.float32)]
        dims = ("parallel", "parallel", "arbitrary")

    out_padded = pl.pallas_call(
        kernel,
        out_shape=jax.ShapeDtypeStruct((Bp, Hp), dtype),
        grid_spec=pltpu.PrefetchScalarGridSpec(
            num_scalar_prefetch=0,
            grid=grid,
            in_specs=in_specs,
            out_specs=out_specs,
            scratch_shapes=scratch,
        ),
        compiler_params=pltpu.CompilerParams(
            dimension_semantics=dims,
            vmem_limit_bytes=vmem_limit,
        ),
    )(xp, wp, bp)

    out = out_padded[:B, :plan.H]
    return out.reshape(orig_shape[:-1] + (plan.H,))


if __name__ == "__main__":
    # Small shapes consistent with the module's forward: x [B, input_dim].
    B, input_dim, hidden_dim = 16, 16, 32

    key = jax.random.PRNGKey(0)
    kx, kw, kb = jax.random.split(key, 3)

    # Deterministic init mimicking nn.Linear default: U(-1/sqrt(in), 1/sqrt(in)).
    # Weight is kept pre-transposed as [input_dim, hidden_dim].
    bound = 1.0 / (input_dim ** 0.5)
    w = jax.random.uniform(kw, (input_dim, hidden_dim), jnp.float32, -bound, bound)
    b = jax.random.uniform(kb, (hidden_dim,), jnp.float32, -bound, bound)
    x = jax.random.normal(kx, (B, input_dim), jnp.float32)

    # One-time param preparation (padding hoisted out of the forward path).
    wp, bp, plan = prepare_linear_params(w, b)
    fwd = jax.jit(lambda x, wp, bp: target_input_layer(x, wp, bp, plan))

    out = jax.block_until_ready(fwd(x, wp, bp))

    # Reference check (pure JAX).
    ref = jnp.maximum(x @ w + b, 0.0)
    assert out.shape == (B, hidden_dim)
    assert jnp.allclose(out, ref, atol=1e-5, rtol=1e-5)

    print("KERNEL_OK")
</pallas_src>

<mosaic_0001>
module attributes {stable_mosaic.version = 11 : i64} {
  func.func @_linear_relu_kernel_single_k(%arg0: i32, %arg1: i32, %arg2: memref<16x128xf32, #tpu.memory_space<vmem>>, %arg3: memref<128x128xf32, #tpu.memory_space<vmem>>, %arg4: memref<1x128xf32, #tpu.memory_space<vmem>>, %arg5: memref<16x128xf32, #tpu.memory_space<vmem>>) attributes {dimension_semantics = [#tpu.dimension_semantics<parallel>, #tpu.dimension_semantics<parallel>], iteration_bounds = array<i64: 1, 1>, scalar_prefetch = 0 : i64, scratch_operands = 0 : i64, tpu.core_type = #tpu.core_type<tc>, window_params = [{transform_indices = @transform_0, window_bounds = array<i64: 16, 128>}, {transform_indices = @transform_1, window_bounds = array<i64: 128, 128>}, {transform_indices = @transform_2, window_bounds = array<i64: 1, 128>}, {transform_indices = @transform_3, window_bounds = array<i64: 16, 128>}]} {
    %c0 = arith.constant 0 : index
    %c0_0 = arith.constant 0 : index
    %0 = vector.load %arg2[%c0, %c0_0] : memref<16x128xf32, #tpu.memory_space<vmem>>, vector<16x128xf32>
    %c0_1 = arith.constant 0 : index
    %c0_2 = arith.constant 0 : index
    %1 = vector.load %arg3[%c0_1, %c0_2] : memref<128x128xf32, #tpu.memory_space<vmem>>, vector<128x128xf32>
    %cst = arith.constant dense<0.000000e+00> : vector<16x128xf32>
    %2 = tpu.matmul %0, %1, %cst {dimension_numbers = #tpu.dot_dimension_numbers<[1], [0], [0], [1], [0, 0, 1, 1], [], []>} : vector<16x128xf32>, vector<128x128xf32>, vector<16x128xf32> -> vector<16x128xf32>
    %c0_3 = arith.constant 0 : index
    %c0_4 = arith.constant 0 : index
    %3 = vector.load %arg4[%c0_3, %c0_4] : memref<1x128xf32, #tpu.memory_space<vmem>>, vector<1x128xf32>
    %4 = vector.broadcast %3 : vector<1x128xf32> to vector<16x128xf32>
    %5 = arith.addf %2, %4 : vector<16x128xf32>
    %cst_5 = arith.constant 0.000000e+00 : f32
    %6 = vector.broadcast %cst_5 : f32 to vector<16x128xf32>
    %7 = arith.maximumf %5, %6 : vector<16x128xf32>
    %c0_6 = arith.constant 0 : index
    %c0_7 = arith.constant 0 : index
    %8 = vector.load %arg5[%c0_6, %c0_7] : memref<16x128xf32, #tpu.memory_space<vmem>>, vector<16x128xf32>
    tpu.vector_store %arg5[%c0_6, %c0_7], %7 {strides = array<i32>} : memref<16x128xf32, #tpu.memory_space<vmem>>, vector<16x128xf32>,
    return
  }
  func.func @transform_0(%arg0: i32, %arg1: i32) -> (i32, i32) {
    %c0_i32 = arith.constant 0 : i32
    %c0_i32_0 = arith.constant 0 : i32
    return %arg0, %c0_i32 : i32, i32
  }
  func.func @transform_1(%arg0: i32, %arg1: i32) -> (i32, i32) {
    %c0_i32 = arith.constant 0 : i32
    %c0_i32_0 = arith.constant 0 : i32
    return %c0_i32, %arg1 : i32, i32
  }
  func.func @transform_2(%arg0: i32, %arg1: i32) -> (i32, i32) {
    %c0_i32 = arith.constant 0 : i32
    %c0_i32_0 = arith.constant 0 : i32
    return %c0_i32, %arg1 : i32, i32
  }
  func.func @transform_3(%arg0: i32, %arg1: i32) -> (i32, i32) {
    %c0_i32 = arith.constant 0 : i32
    return %arg0, %arg1 : i32, i32
  }
}

</mosaic_0001>

<llo_original>
// kernel: _lambda_.1
$region0: #{_lambda_.1}
  #allocation0 [shape = 'u32[]', space=smem, size = 0x4, offset = 0x4, fixed_abs, tag = 'smem constant byte address 0x4 - core index']
  #allocation1 [shape = 'u32[144,128]{1,0:T(1,128)}', space=vmem, size = 0x12000, scoped, tag = 'internal scratch']
  %s0 = inlined_call_operand.vmem [shape: f32[16,128], index: 0, kind: input, shape index: {}]
  %s1 = inlined_call_operand.hbm [shape: f32[128,128], index: 1, kind: input, shape index: {}]
  %s2 = inlined_call_operand.vmem [shape: f32[1,128], index: 2, kind: input, shape index: {}]
  %s3 = inlined_call_operand.hbm [shape: f32[16,128], index: 3, kind: output, shape index: {}]
  %s4 = sld [smem:[#allocation0]]
  $region26: #{_lambda_.1} parent=0
    _
  %s6 = ssub.s32 1, %s4
  %s7 = scalar_select 0, %s6, %s4
  $region1: #{_lambda_.1} parent=0
    #allocation2 [shape = 'u8[65536]{0}', space=vmem, size = 0x10000, scoped, tag = 'input window, operand 1, single buffered']
    #allocation3 [shape = 's32[1]{0}', space=sflag, size = 0x4, scoped, tag = 'scoped memory for _lambda_.1']
    #allocation4 [shape = 's32[1]{0}', space=sflag, size = 0x4, scoped, tag = 'scoped memory for _lambda_.1']
    #allocation5 [shape = 'u8[8192]{0}', space=vmem, size = 0x2000, scoped, tag = 'output window, operand 0, single buffered']
    %8 = vsyncpa [#allocation3], 0
    %9 = vsyncpa [#allocation4], 0
    // Predicated region
    $region2: #{_lambda_.1} parent=1 // pred_check
      _
    $region3: #{_lambda_.1} parent=1 // pred_check_branch
      %11 = sbr.rel (0) target = $region5
    $region4: #{_lambda_.1} parent=1 // pred_region
      _
    $region5: #{_lambda_.1} parent=1 // pred_fallthru
      _
    // Predicated region
    $region6: #{_lambda_.1} parent=1 // pred_check
      _
    $region7: #{_lambda_.1} parent=1 // pred_check_branch
      %13 = sbr.rel (0) target = $region9
    $region8: #{_lambda_.1} parent=1 // pred_region
      %s15 = ssub.s32 2048, 2048
      %16 = vsyncadd [#allocation3], %s15
      %s17 = sshll.u32 [#allocation2], 4
      %s18 = int_to_ptr.vmem [resolvable:$true] %s17
      %23 = dma.hbm_to_vmem [thread:$0]  %s1, 2048, %s18, [#allocation3], 128, 128, 8
    $region9: #{_lambda_.1} parent=1 // pred_fallthru
      _
    // Predicated region
    $region10: #{_lambda_.1} parent=1 // pred_check
      _
    $region11: #{_lambda_.1} parent=1 // pred_check_branch
      %25 = sbr.rel (0) target = $region13
    $region12: #{_lambda_.1} parent=1 // pred_region
      _
    $region13: #{_lambda_.1} parent=1 // pred_fallthru
      _
    // Predicated region
    $region14: #{_lambda_.1} parent=1 // pred_check
      _
    $region15: #{_lambda_.1} parent=1 // pred_check_branch
      %27 = sbr.rel (0) target = $region17
    $region16: #{_lambda_.1} parent=1 // pred_region
      %28 = dma.done [#allocation3], 2048
    $region17: #{_lambda_.1} parent=1 // pred_fallthru
      _
    %v29 = vld [vmem:[%s0] sm:$0xff]
    %v30 = vld [vmem:[%s0 + $0x8] sm:$0xff]
    %v31 = vld [vmem:[#allocation2] sm:$0xff]
    %v32 = vld [vmem:[#allocation2 + $0x8] sm:$0xff]
    %v33 = vld [vmem:[#allocation2 + $0x10] sm:$0xff]
    %v34 = vld [vmem:[#allocation2 + $0x18] sm:$0xff]
    %v35 = vld [vmem:[#allocation2 + $0x20] sm:$0xff]
    %v36 = vld [vmem:[#allocation2 + $0x28] sm:$0xff]
    %v37 = vld [vmem:[#allocation2 + $0x30] sm:$0xff]
    %v38 = vld [vmem:[#allocation2 + $0x38] sm:$0xff]
    %v39 = vld [vmem:[#allocation2 + $0x40] sm:$0xff]
    %v40 = vld [vmem:[#allocation2 + $0x48] sm:$0xff]
    %v41 = vld [vmem:[#allocation2 + $0x50] sm:$0xff]
    %v42 = vld [vmem:[#allocation2 + $0x58] sm:$0xff]
    %v43 = vld [vmem:[#allocation2 + $0x60] sm:$0xff]
    %v44 = vld [vmem:[#allocation2 + $0x68] sm:$0xff]
    %v45 = vld [vmem:[#allocation2 + $0x70] sm:$0xff]
    %v46 = vld [vmem:[#allocation2 + $0x78] sm:$0xff]
    %v47 = vld [vmem:[%s2] sm:$0x1]
    %v49 = vlaneseq
    %v50 = vshrl.u32 %v49, 7
    %v51 = vsub.s32 0, %v50
    %v52 = vrot.slane %v47, %v51
    %54 = vmatprep.subr.mxu0 0.0
    %55 = vmatpush1.msra.mxu0 %v46
    %56 = vmatprep.subr.mxu0 0.0
    %57 = vmatpush1.msra.mxu0 %v45
    %58 = vmatprep.subr.mxu0 0.0
    %59 = vmatpush1.msra.mxu0 %v44
    %60 = vmatprep.subr.mxu0 0.0
    %61 = vmatpush1.msra.mxu0 %v43
    %62 = vmatprep.subr.mxu0 0.0
    %63 = vmatpush1.msra.mxu0 %v42
    %64 = vmatprep.subr.mxu0 0.0
    %65 = vmatpush1.msra.mxu0 %v41
    %66 = vmatprep.subr.mxu0 0.0
    %67 = vmatpush1.msra.mxu0 %v40
    %68 = vmatprep.subr.mxu0 0.0
    %69 = vmatpush1.msra.mxu0 %v39
    %70 = vmatprep.subr.mxu0 0.0
    %71 = vmatpush1.msra.mxu0 %v38
    %72 = vmatprep.subr.mxu0 0.0
    %73 = vmatpush1.msra.mxu0 %v37
    %74 = vmatprep.subr.mxu0 0.0
    %75 = vmatpush1.msra.mxu0 %v36
    %76 = vmatprep.subr.mxu0 0.0
    %77 = vmatpush1.msra.mxu0 %v35
    %78 = vmatprep.subr.mxu0 0.0
    %79 = vmatpush1.msra.mxu0 %v34
    %80 = vmatprep.subr.mxu0 0.0
    %81 = vmatpush1.msra.mxu0 %v33
    %82 = vmatprep.subr.mxu0 0.0
    %83 = vmatpush1.msra.mxu0 %v32
    %84 = vmatprep.subr.mxu0 0.0
    %85 = vmatpush1.msra.mxu0 %v31
    %86 = vmatprep.subr.mxu0 0.0
    %87 = vmatpush2.msra.mxu0 0.0
    %88 = vmatprep.subr.mxu0 0.0
    %89 = vmatpush2.msra.mxu0 0.0
    %90 = vmatprep.subr.mxu0 0.0
    %91 = vmatpush2.msra.mxu0 0.0
    %92 = vmatprep.subr.mxu0 0.0
    %93 = vmatpush2.msra.mxu0 0.0
    %94 = vmatprep.subr.mxu0 0.0
    %95 = vmatpush2.msra.mxu0 0.0
    %96 = vmatprep.subr.mxu0 0.0
    %97 = vmatpush2.msra.mxu0 0.0
    %98 = vmatprep.subr.mxu0 0.0
    %99 = vmatpush2.msra.mxu0 0.0
    %100 = vmatprep.subr.mxu0 0.0
    %101 = vmatpush2.msra.mxu0 0.0
    %102 = vmatprep.subr.mxu0 0.0
    %103 = vmatpush2.msra.mxu0 0.0
    %104 = vmatprep.subr.mxu0 0.0
    %105 = vmatpush2.msra.mxu0 0.0
    %106 = vmatprep.subr.mxu0 0.0
    %107 = vmatpush2.msra.mxu0 0.0
    %108 = vmatprep.subr.mxu0 0.0
    %109 = vmatpush2.msra.mxu0 0.0
    %110 = vmatprep.subr.mxu0 0.0
    %111 = vmatpush2.msra.mxu0 0.0
    %112 = vmatprep.subr.mxu0 0.0
    %113 = vmatpush2.msra.mxu0 0.0
    %114 = vmatprep.subr.mxu0 0.0
    %115 = vmatpush2.msra.mxu0 0.0
    %116 = vmatprep.subr.mxu0 0.0
    %117 = vmatpush2.msra.mxu0 0.0
    %118 = vmatprep.mubr.f32.mxu0 0.0
    %119 = vmatmul.mubr.f32.gmra.mxu0 %v29
    %v120 = vpop.f32.mrf.mxu0
    %v121 = vadd.f32 %v52, %v120
    %v122 = vpop.f32.mrf.mxu0
    %123 = vmatprep.mubr.f32.mxu0 0.0
    %124 = vmatmul.mubr.f32.gmra.mxu0 %v30
    %v125 = vpop.f32.mrf.mxu0
    %v126 = vadd.f32 %v52, %v125
    %v127 = vpop.f32.mrf.mxu0
    %128 = vdwg.mxu0
    %v129 = vmax.f32 %v121, 0.0
    %v130 = vmax.f32 %v126, 0.0
    %131 = vst [vmem:[#allocation5] sm:$0xff] %v129
    %132 = vst [vmem:[#allocation5 + $0x8] sm:$0xff] %v130
    // Predicated region
    $region18: #{_lambda_.1} parent=1 // pred_check
      _
    $region19: #{_lambda_.1} parent=1 // pred_check_branch
      %134 = sbr.rel (0) target = $region21
    $region20: #{_lambda_.1} parent=1 // pred_region
      %s136 = ssub.s32 256, 256
      %137 = vsyncadd [#allocation4], %s136
      %s138 = sshll.u32 [#allocation5], 4
      %s139 = int_to_ptr.vmem [resolvable:$true] %s138
      %144 = dma.vmem_to_hbm [thread:$0]  %s139, 256, %s3, [#allocation4], 128, 128, 8
    $region21: #{_lambda_.1} parent=1 // pred_fallthru
      _
    // Predicated region
    $region22: #{_lambda_.1} parent=1 // pred_check
      _
    $region23: #{_lambda_.1} parent=1 // pred_check_branch
      %146 = sbr.rel (0) target = $region25
    $region24: #{_lambda_.1} parent=1 // pred_region
      %147 = dma.done [#allocation4], 256
    $region25: #{_lambda_.1} parent=1 // pred_fallthru
      _
    %148 = vsyncpa [#allocation3], 1
    %149 = vsyncpa [#allocation4], 1

</llo_original>
